<compile_context>
chip_gen: v7x
topology: tpu7x:2x2x1
jax: 0.10.0
libtpu: 0.0.40
codegen_flags: <defaults>
</compile_context>

<pallas_src>
import functools

import jax
import jax.numpy as jnp
from jax.experimental import pallas as pl
from jax.experimental.pallas import tpu as pltpu

_NEG_BIG = -1e30  # class-dim pad value: exp() underflows to exactly 0 in f32.


def _ce_label_smooth_kernel(pred_ref, tgt_ref, out_ref, *, label_smooth, class_num):
    """label_smooth is not None branch of CELoss.forward (one batch tile)."""
    pred = pred_ref[...]                               # (T, C_pad) f32
    tgt = tgt_ref[...]                                 # (T, 1) int32, -1 == pad row
    t, c_pad = pred.shape

    col = jax.lax.broadcasted_iota(jnp.int32, (t, c_pad), 1)
    col_valid = col < class_num                        # mask padded class columns
    is_tgt = col == tgt                                # padded rows (tgt=-1) match nothing

    # log_softmax(pred, dim=1): padded columns hold -1e30 -> contribute 0 to lse.
    row_max = jnp.max(pred, axis=1, keepdims=True)
    shifted = pred - row_max
    lse = jnp.log(jnp.sum(jnp.exp(shifted), axis=1, keepdims=True))   # (T, 1)

    # sum_{real classes} logprobs = sum_{real classes} shifted - class_num * lse
    sum_shift = jnp.sum(jnp.where(col_valid, shifted, 0.0), axis=1, keepdims=True)
    sum_logprobs = sum_shift - jnp.float32(class_num) * lse           # (T, 1)

    # logprobs[target] = shifted[target] - lse
    shift_at_tgt = jnp.sum(jnp.where(is_tgt, shifted, 0.0), axis=1, keepdims=True)
    logp_at_tgt = shift_at_tgt - lse                                  # (T, 1)

    # clamp(onehot, lo, hi) == lo off-target, hi on-target  (0 < label_smooth < 1)
    lo = jnp.float32(label_smooth / (class_num - 1))
    hi = jnp.float32(1.0 - label_smooth)
    per_row = -(lo * sum_logprobs + (hi - lo) * logp_at_tgt)          # (T, 1)

    per_row = jnp.where(tgt >= 0, per_row, 0.0)        # drop padded batch rows
    out_ref[0, 0] = jnp.sum(per_row)                   # per-tile partial sum


def _ce_plain_kernel(pred_ref, tgt_ref, out_ref, *, class_num):
    """label_smooth is None branch of CELoss.forward (one batch tile)."""
    # NOTE: follows the torch source literally: log(sum(exp(pred + eps), 1)).
    # eps=1e-12 inside the exp is below f32 ulp of typical logits; kept for parity.
    del class_num
    eps = jnp.float32(1e-12)
    pred = pred_ref[...]                               # (T, C_pad) f32
    tgt = tgt_ref[...]                                 # (T, 1) int32, -1 == pad row
    t, c_pad = pred.shape

    col = jax.lax.broadcasted_iota(jnp.int32, (t, c_pad), 1)
    is_tgt = col == tgt

    # pred.gather(1, target) via compare + select + row-sum (no float one-hot)
    gathered = jnp.sum(jnp.where(is_tgt, pred, 0.0), axis=1, keepdims=True)  # (T, 1)

    # log(exp(pred + eps).sum(1)) — numerically-stable rewrite, identical value.
    # Padded class columns (-1e30) contribute exactly 0 to the exp-sum.
    shifted_in = pred + eps
    row_max = jnp.max(shifted_in, axis=1, keepdims=True)
    lse = row_max + jnp.log(
        jnp.sum(jnp.exp(shifted_in - row_max), axis=1, keepdims=True))       # (T, 1)

    per_row = -gathered + lse
    per_row = jnp.where(tgt >= 0, per_row, 0.0)        # drop padded batch rows
    out_ref[0, 0] = jnp.sum(per_row)                   # per-tile partial sum


def ce_loss(pred, target, *, label_smooth=None, class_num=137, tile_rows=None):
    """JAX/Pallas equivalent of CELoss(label_smooth, class_num)(pred, target).

    pred:   float   [N, class_num]
    target: int     [N]
    returns float32 scalar (mean loss over the N real rows)
    """
    n, c = pred.shape
    assert c == class_num, "pred's class dim must match class_num"

    # Lane-dense class dim: pad to a multiple of 128 with -1e30 (softmax-neutral).
    c_pad = max(128, ((c + 127) // 128) * 128)

    # Batch tile: multiple of 8 sublanes, capped at 1024 rows (~1 MiB/buffer at
    # 256 padded lanes -> fits default scoped VMEM on v5e/v6e/v7x when
    # double-buffered).
    if tile_rows is None:
        tile_rows = min(1024, ((n + 7) // 8) * 8)
    tile_rows = max(8, ((tile_rows + 7) // 8) * 8)
    n_pad = ((n + tile_rows - 1) // tile_rows) * tile_rows
    num_tiles = n_pad // tile_rows

    pred_p = jnp.pad(
        pred.astype(jnp.float32),
        ((0, n_pad - n), (0, c_pad - c)),
        constant_values=jnp.float32(_NEG_BIG),
    )
    tgt_p = jnp.pad(
        target.astype(jnp.int32).reshape(n, 1),
        ((0, n_pad - n), (0, 0)),
        constant_values=-1,                            # marks padded rows
    )

    if label_smooth is not None:
        kernel = functools.partial(
            _ce_label_smooth_kernel,
            label_smooth=float(label_smooth),
            class_num=int(class_num),
        )
    else:
        kernel = functools.partial(_ce_plain_kernel, class_num=int(class_num))

    partials = pl.pallas_call(
        kernel,
        out_shape=jax.ShapeDtypeStruct((num_tiles, 1), jnp.float32),
        grid=(num_tiles,),
        in_specs=[
            pl.BlockSpec((tile_rows, c_pad), lambda i: (i, 0)),   # pred tile
            pl.BlockSpec((tile_rows, 1), lambda i: (i, 0)),       # target tile
        ],
        out_specs=pl.BlockSpec(
            (1, 1), lambda i: (i, 0), memory_space=pltpu.MemorySpace.SMEM
        ),
        compiler_params=pltpu.CompilerParams(
            # Independent per-tile partial sums -> safe to parallelize; uses
            # both TensorCores on v7x, no-op on single-TC v5e/v6e.
            dimension_semantics=("parallel",),
        ),
    )(pred_p, tgt_p)

    # Divide by the *true* batch size, not the padded one.
    return jnp.sum(partials) / jnp.float32(n)


def _ce_loss_reference(pred, target, *, label_smooth=None, class_num=137):
    """Pure-JAX reference mirroring the PyTorch module, for verification."""
    eps = 1e-12
    pred = pred.astype(jnp.float32)
    if label_smooth is not None:
        logprobs = jax.nn.log_softmax(pred, axis=1)
        onehot = jax.nn.one_hot(target, class_num, dtype=jnp.float32)
        smoothed = jnp.clip(onehot, label_smooth / (class_num - 1), 1.0 - label_smooth)
        loss = -jnp.sum(smoothed * logprobs, axis=1)
    else:
        gathered = jnp.take_along_axis(pred, target[:, None], axis=1)[:, 0]
        loss = -gathered + jnp.log(jnp.sum(jnp.exp(pred + eps), axis=1))
    return jnp.mean(loss)


if __name__ == "__main__":
    key = jax.random.PRNGKey(0)
    CLASS_NUM = 137            # module default
    LABEL_SMOOTH = 0.1

    # Case 1: small batch, single tile.
    k1, k2, k3, k4 = jax.random.split(key, 4)
    N1 = 8
    pred1 = jax.random.normal(k1, (N1, CLASS_NUM), dtype=jnp.float32)
    tgt1 = jax.random.randint(k2, (N1,), 0, CLASS_NUM, dtype=jnp.int32)

    loss_ls = jax.block_until_ready(
        ce_loss(pred1, tgt1, label_smooth=LABEL_SMOOTH, class_num=CLASS_NUM))
    ref_ls = _ce_loss_reference(pred1, tgt1, label_smooth=LABEL_SMOOTH, class_num=CLASS_NUM)
    assert jnp.allclose(loss_ls, ref_ls, rtol=1e-5, atol=1e-5), (loss_ls, ref_ls)

    loss_pl = jax.block_until_ready(
        ce_loss(pred1, tgt1, label_smooth=None, class_num=CLASS_NUM))
    ref_pl = _ce_loss_reference(pred1, tgt1, label_smooth=None, class_num=CLASS_NUM)
    assert jnp.allclose(loss_pl, ref_pl, rtol=1e-5, atol=1e-5), (loss_pl, ref_pl)

    # Case 2: batch not a multiple of the tile -> exercises multi-tile grid,
    # partial-sum accumulation, and padded-row masking (tile forced to 8 rows).
    N2 = 20
    pred2 = jax.random.normal(k3, (N2, CLASS_NUM), dtype=jnp.float32)
    tgt2 = jax.random.randint(k4, (N2,), 0, CLASS_NUM, dtype=jnp.int32)

    loss_ls2 = jax.block_until_ready(
        ce_loss(pred2, tgt2, label_smooth=LABEL_SMOOTH, class_num=CLASS_NUM, tile_rows=8))
    ref_ls2 = _ce_loss_reference(pred2, tgt2, label_smooth=LABEL_SMOOTH, class_num=CLASS_NUM)
    assert jnp.allclose(loss_ls2, ref_ls2, rtol=1e-5, atol=1e-5), (loss_ls2, ref_ls2)

    loss_pl2 = jax.block_until_ready(
        ce_loss(pred2, tgt2, label_smooth=None, class_num=CLASS_NUM, tile_rows=8))
    ref_pl2 = _ce_loss_reference(pred2, tgt2, label_smooth=None, class_num=CLASS_NUM)
    assert jnp.allclose(loss_pl2, ref_pl2, rtol=1e-5, atol=1e-5), (loss_pl2, ref_pl2)

    print("KERNEL_OK")
</pallas_src>

<mosaic_0001>
module attributes {stable_mosaic.version = 11 : i64} {
  func.func @_ce_label_smooth_kernel(%arg0: i32, %arg1: memref<8x256xf32, #tpu.memory_space<vmem>>, %arg2: memref<8x1xi32, #tpu.memory_space<vmem>>, %arg3: memref<1x1xf32, #tpu.memory_space<smem>>) attributes {dimension_semantics = [#tpu.dimension_semantics<parallel>], iteration_bounds = array<i64: 1>, scalar_prefetch = 0 : i64, scratch_operands = 0 : i64, tpu.core_type = #tpu.core_type<tc>, window_params = [{transform_indices = @transform_0, window_bounds = array<i64: 8, 256>}, {transform_indices = @transform_1, window_bounds = array<i64: 8, 1>}, {transform_indices = @transform_2, window_bounds = array<i64: 1, 1>}]} {
    %c0 = arith.constant 0 : index
    %c0_0 = arith.constant 0 : index
    %0 = vector.load %arg1[%c0, %c0_0] : memref<8x256xf32, #tpu.memory_space<vmem>>, vector<8x256xf32>
    %c0_1 = arith.constant 0 : index
    %c0_2 = arith.constant 0 : index
    %1 = vector.load %arg2[%c0_1, %c0_2] : memref<8x1xi32, #tpu.memory_space<vmem>>, vector<8x1xi32>
    %2 = tpu.iota {dimensions = array<i32: 1>} : vector<8x256xi32>
    %c137_i32 = arith.constant 137 : i32
    %3 = vector.broadcast %c137_i32 : i32 to vector<8x256xi32>
    %4 = arith.cmpi slt, %2, %3 : vector<8x256xi32>
    %5 = vector.broadcast %1 : vector<8x1xi32> to vector<8x256xi32>
    %6 = arith.cmpi eq, %2, %5 : vector<8x256xi32>
    %cst = arith.constant dense<0xFF800000> : vector<8xf32>
    %7 = vector.multi_reduction <maximumf>, %0, %cst [1] : vector<8x256xf32> to vector<8xf32>
    %8 = vector.shape_cast %7 : vector<8xf32> to vector<8x1xf32>
    %9 = vector.broadcast %8 : vector<8x1xf32> to vector<8x256xf32>
    %10 = arith.subf %0, %9 : vector<8x256xf32>
    %11 = math.exp %10 : vector<8x256xf32>
    %cst_3 = arith.constant dense<0.000000e+00> : vector<8xf32>
    %12 = vector.multi_reduction <add>, %11, %cst_3 [1] : vector<8x256xf32> to vector<8xf32>
    %13 = vector.shape_cast %12 : vector<8xf32> to vector<8x1xf32>
    %14 = math.log %13 : vector<8x1xf32>
    %cst_4 = arith.constant 0.000000e+00 : f32
    %15 = vector.broadcast %cst_4 : f32 to vector<8x256xf32>
    %16 = arith.select %4, %10, %15 : vector<8x256xi1>, vector<8x256xf32>
    %cst_5 = arith.constant dense<0.000000e+00> : vector<8xf32>
    %17 = vector.multi_reduction <add>, %16, %cst_5 [1] : vector<8x256xf32> to vector<8xf32>
    %18 = vector.shape_cast %17 : vector<8xf32> to vector<8x1xf32>
    %cst_6 = arith.constant 1.370000e+02 : f32
    %19 = vector.broadcast %cst_6 : f32 to vector<8x1xf32>
    %20 = arith.mulf %19, %14 : vector<8x1xf32>
    %21 = arith.subf %18, %20 : vector<8x1xf32>
    %cst_7 = arith.constant 0.000000e+00 : f32
    %22 = vector.broadcast %cst_7 : f32 to vector<8x256xf32>
    %23 = arith.select %6, %10, %22 : vector<8x256xi1>, vector<8x256xf32>
    %cst_8 = arith.constant dense<0.000000e+00> : vector<8xf32>
    %24 = vector.multi_reduction <add>, %23, %cst_8 [1] : vector<8x256xf32> to vector<8xf32>
    %25 = vector.shape_cast %24 : vector<8xf32> to vector<8x1xf32>
    %26 = arith.subf %25, %14 : vector<8x1xf32>
    %cst_9 = arith.constant 7.35294132E-4 : f32
    %27 = vector.broadcast %cst_9 : f32 to vector<8x1xf32>
    %28 = arith.mulf %27, %21 : vector<8x1xf32>
    %cst_10 = arith.constant 0.899999976 : f32
    %cst_11 = arith.constant 7.35294132E-4 : f32
    %29 = arith.subf %cst_10, %cst_11 : f32
    %30 = vector.broadcast %29 : f32 to vector<8x1xf32>
    %31 = arith.mulf %30, %26 : vector<8x1xf32>
    %32 = arith.addf %28, %31 : vector<8x1xf32>
    %cst_12 = arith.constant 0.000000e+00 : f32
    %33 = vector.broadcast %cst_12 : f32 to vector<8x1xf32>
    %34 = arith.subf %33, %32 : vector<8x1xf32>
    %c0_i32 = arith.constant 0 : i32
    %35 = vector.broadcast %c0_i32 : i32 to vector<8x1xi32>
    %36 = arith.cmpi sge, %1, %35 : vector<8x1xi32>
    %cst_13 = arith.constant 0.000000e+00 : f32
    %37 = vector.broadcast %cst_13 : f32 to vector<8x1xf32>
    %38 = arith.select %36, %34, %37 : vector<8x1xi1>, vector<8x1xf32>
    %39 = vector.shape_cast %38 : vector<8x1xf32> to vector<1x8x1xf32>
    %cst_14 = arith.constant dense<0.000000e+00> : vector<1xf32>
    %40 = vector.multi_reduction <add>, %39, %cst_14 [1, 2] : vector<1x8x1xf32> to vector<1xf32>
    %41 = vector.shape_cast %40 : vector<1xf32> to vector<1x1x1xf32>
    %42 = vector.extract %41[0, 0, 0] : f32 from vector<1x1x1xf32>
    %c0_15 = arith.constant 0 : index
    %c0_16 = arith.constant 0 : index
    %43 = memref.load %arg3[%c0_15, %c0_16] : memref<1x1xf32, #tpu.memory_space<smem>>
    memref.store %42, %arg3[%c0_15, %c0_16] : memref<1x1xf32, #tpu.memory_space<smem>>
    return
  }
  func.func @transform_0(%arg0: i32) -> (i32, i32) {
    %c0_i32 = arith.constant 0 : i32
    %c0_i32_0 = arith.constant 0 : i32
    return %arg0, %c0_i32 : i32, i32
  }
  func.func @transform_1(%arg0: i32) -> (i32, i32) {
    %c0_i32 = arith.constant 0 : i32
    %c0_i32_0 = arith.constant 0 : i32
    return %arg0, %c0_i32 : i32, i32
  }
  func.func @transform_2(%arg0: i32) -> (i32, i32) {
    %c0_i32 = arith.constant 0 : i32
    %c0_i32_0 = arith.constant 0 : i32
    return %arg0, %c0_i32 : i32, i32
  }
}

</mosaic_0001>

<llo_original>
// kernel: tpu_custom_call.1
$region0: #{tpu_custom_call.1}
  #allocation0 [shape = 'u32[]', space=smem, size = 0x4, offset = 0x4, fixed_abs, tag = 'smem constant byte address 0x4 - core index']
  #allocation1 [shape = 'u32[144,128]{1,0:T(1,128)}', space=vmem, size = 0x12000, scoped, tag = 'internal scratch']
  %s0 = inlined_call_operand.hbm [shape: f32[8,256], index: 0, kind: input, shape index: {}]
  %s1 = inlined_call_operand.vmem [shape: s32[8,1], index: 1, kind: input, shape index: {}]
  %s2 = inlined_call_operand.hbm [shape: f32[1,1], index: 2, kind: output, shape index: {}]
  %s3 = sld [smem:[#allocation0]]
  $region22: #{tpu_custom_call.1} parent=0
    _
  %s5 = ssub.s32 1, %s3
  %s6 = scalar_select 0, %s5, %s3
  $region1: #{tpu_custom_call.1} parent=0
    #allocation2 [shape = 'u8[8192]{0}', space=vmem, size = 0x2000, scoped, tag = 'input window, operand 0, single buffered']
    #allocation3 [shape = 's32[1]{0}', space=sflag, size = 0x4, scoped, tag = 'scoped memory for tpu_custom_call.1']
    #allocation4 [shape = 's32[1]{0}', space=sflag, size = 0x4, scoped, tag = 'scoped memory for tpu_custom_call.1']
    #allocation5 [shape = 'u8[512]{0}', space=smem, size = 0x200, scoped, tag = 'output window, operand 0, single buffered']
    %7 = vsyncpa [#allocation3], 0
    %8 = vsyncpa [#allocation4], 0
    // Predicated region
    $region2: #{tpu_custom_call.1} parent=1 // pred_check
      _
    $region3: #{tpu_custom_call.1} parent=1 // pred_check_branch
      %10 = sbr.rel (0) target = $region5
    $region4: #{tpu_custom_call.1} parent=1 // pred_region
      %s12 = ssub.s32 256, 256
      %13 = vsyncadd [#allocation3], %s12
      %s15 = sshll.u32 [#allocation2], 4
      %s16 = int_to_ptr.vmem [resolvable:$true] %s15
      %18 = dma.hbm_to_vmem [thread:$0]  %s0, 256, %s16, [#allocation3]
    $region5: #{tpu_custom_call.1} parent=1 // pred_fallthru
      _
    // Predicated region
    $region6: #{tpu_custom_call.1} parent=1 // pred_check
      _
    $region7: #{tpu_custom_call.1} parent=1 // pred_check_branch
      %20 = sbr.rel (0) target = $region9
    $region8: #{tpu_custom_call.1} parent=1 // pred_region
      _
    $region9: #{tpu_custom_call.1} parent=1 // pred_fallthru
      _
    // Predicated region
    $region10: #{tpu_custom_call.1} parent=1 // pred_check
      _
    $region11: #{tpu_custom_call.1} parent=1 // pred_check_branch
      %22 = sbr.rel (0) target = $region13
    $region12: #{tpu_custom_call.1} parent=1 // pred_region
      %23 = dma.done [#allocation3], 256
    $region13: #{tpu_custom_call.1} parent=1 // pred_fallthru
      _
    %v24 = vld [vmem:[#allocation2] sm:$0xff]
    %v25 = vld [vmem:[#allocation2 + $0x8] sm:$0xff]
    %v26 = vld [vmem:[%s1] sm:$0xff]
    %v27 = vlaneseq
    %v28 = vand.u32 %v27, 127
    %v29 = vadd.s32 %v28, 128
    %vm30 = vcmp.lt.s32.totalorder %v28, 137
    %vm31 = vcmp.lt.s32.totalorder %v29, 137
    %32 = vset.pattern.permute.xlu0 0
    %33 = vperm.xlu0 %32, %v26
    %v34 = vpop.permute.xlu0 %33
    %vm35 = vcmp.eq.s32.totalorder %v28, %v34
    %vm36 = vcmp.eq.s32.totalorder %v29, %v34
    %v37 = vmax.f32 %v24, %v25
    %38 = vmax.xlane.f32.xlu0 %v37
    %v39 = vpop.xlane.xlu0 %38
    %v40 = vsub.f32 %v24, %v39
    %v41 = vsub.f32 %v25, %v39
    %v42 = vmul.f32 %v40, 1.442695
    %v43 = vpow.pop %v42
    %v44 = vmul.f32 %v41, 1.442695
    %v45 = vpow.pop %v44
    %v46 = vadd.f32 %v43, %v45
    %47 = vadd.xlane.f32.xlu0 %v46
    %v48 = vpop.xlane.xlu0 %47
    %v49 = vlog2.pop %v48
    %v50 = vmul.f32 %v49, 0.6931472
    %v51 = vsel %vm30, %v40, 0.0
    %v52 = vsel %vm31, %v41, 0.0
    %v53 = vadd.f32 %v51, %v52
    %54 = vadd.xlane.f32.xlu0 %v53
    %v55 = vpop.xlane.xlu0 %54
    %v56 = vmul.f32 %v50, 137.0
    %v57 = vsub.f32 %v55, %v56
    %v58 = vsel %vm35, %v40, 0.0
    %v59 = vsel %vm36, %v41, 0.0
    %v60 = vadd.f32 %v58, %v59
    %61 = vadd.xlane.f32.xlu0 %v60
    %v62 = vpop.xlane.xlu0 %61
    %v63 = vsub.f32 %v62, %v50
    %v64 = vmul.f32 %v57, 0.00073529413
    %v65 = vmul.f32 %v63, 0.8992647
    %v66 = vadd.f32 %v64, %v65
    %v67 = vsub.f32 0.0, %v66
    %vm68 = vcmp.ge.s32.totalorder %v26, 0
    %v69 = vsel %vm68, %v67, 0.0
    %vm70 = vcmask 7168
    %v71 = vsel %vm70, %v69, 0.0
    %72 = vadd.xlane.f32.xlu0 %v71
    %v73 = vpop.xlane.xlu0 %72
    %v74 = vrot.slane %v73, 4
    %v75 = vadd.f32 %v73, %v74
    %v76 = vrot.slane %v75, 2
    %v77 = vadd.f32 %v75, %v76
    %v78 = vrot.slane %v77, 1
    %v79 = vadd.f32 %v77, %v78
    %s80 = vtos %v79
    %s81 = scalar_lea.smem [#allocation5], 0
    %82 = sst [smem:[%s81]] %s80
    // Predicated region
    $region14: #{tpu_custom_call.1} parent=1 // pred_check
      _
    $region15: #{tpu_custom_call.1} parent=1 // pred_check_branch
      %84 = sbr.rel (0) target = $region17
    $region16: #{tpu_custom_call.1} parent=1 // pred_region
      %s86 = ssub.s32 16, 16
      %87 = vsyncadd [#allocation4], %s86
      %90 = dma.smem_to_hbm [#allocation5], 16, %s2, [#allocation4]
    $region17: #{tpu_custom_call.1} parent=1 // pred_fallthru
      _
    // Predicated region
    $region18: #{tpu_custom_call.1} parent=1 // pred_check
      _
    $region19: #{tpu_custom_call.1} parent=1 // pred_check_branch
      %92 = sbr.rel (0) target = $region21
    $region20: #{tpu_custom_call.1} parent=1 // pred_region
      %93 = dma.done [#allocation4], 16
    $region21: #{tpu_custom_call.1} parent=1 // pred_fallthru
      _
    %94 = sfence
    %95 = vsyncpa [#allocation3], 1
    %96 = vsyncpa [#allocation4], 1

</llo_original>
